<compile_context>
chip_gen: v7x
topology: tpu7x:2x2x1
jax: 0.10.0
libtpu: 0.0.40
codegen_flags: <defaults>
</compile_context>

<pallas_src>
import functools

import jax
import jax.numpy as jnp
from jax.experimental import pallas as pl
from jax.experimental.pallas import tpu as pltpu


_LANE = 128
_BLOCK_BUDGET_BYTES = 16 * 1024 * 1024   # double-buffered in+out blocks / step
_VMEM_LIMIT_BYTES = 32 * 1024 * 1024     # safe on v5e / v6e / v7x
_MIN_TOTAL_STEPS = 4                     # >= 2 pipeline steps per TC on v7x


def _round_up(x, m):
    return (x + m - 1) // m * m


def _sublane_rows(itemsize):
    # VMEM tiling is (8, 128) in 32-bit words; sub-32-bit dtypes pack sublanes:
    # f32 -> 8 rows, bf16/f16 -> 16 rows, int8/fp8 -> 32 rows.
    return 8 * (4 // itemsize)


def _pick_tile_hw(hw, rows_in, rows_out, itemsize, extra_f32_rows, leading_steps):
    """Largest layout-legal H*W tile under the VMEM budget (padding aware)."""
    sub = _sublane_rows(itemsize)
    padded_in = _round_up(rows_in, sub)
    padded_out = _round_up(rows_out, sub)
    # Double-buffered input + output blocks, plus in-kernel f32 temporaries.
    per_lane = 2 * (padded_in + padded_out) * itemsize + extra_f32_rows * 4
    tile_max = max(_LANE, (_BLOCK_BUDGET_BYTES // per_lane) // _LANE * _LANE)

    if hw <= tile_max:
        tile = hw                                  # full axis: always legal
    else:
        # Balance the tiles so the tail block is not mostly empty.
        n_tiles = pl.cdiv(hw, tile_max)
        tile = _round_up(pl.cdiv(hw, n_tiles), _LANE)

    # Guarantee enough grid steps to pipeline / use both TensorCores on v7x.
    hw_tiles = pl.cdiv(hw, tile)
    if leading_steps * hw_tiles < _MIN_TOTAL_STEPS and hw >= 2 * _LANE:
        want = min(pl.cdiv(_MIN_TOTAL_STEPS, leading_steps), hw // _LANE)
        if want > hw_tiles:
            tile = _round_up(pl.cdiv(hw, want), _LANE)
    return tile


def _vpu_packed_kernel(n_pack, c_in, c_out, x_ref, w_ref, b_ref, o_ref):
    """Tiny-channel path: all batches packed into the sublane dimension.

    x_ref: (n_pack*c_in, T) VMEM      w_ref: (c_out, c_in) f32 SMEM
    b_ref: (c_out,)        f32 SMEM   o_ref: (n_pack*c_out, T) VMEM

    Unrolled VPU broadcast-FMAs; input rows are read one at a time (no
    full-tile f32 copy) and each output row is stored directly (no concat).
    """
    for b in range(n_pack):                        # static unroll
        xi = b * c_in
        for co in range(c_out):
            acc = x_ref[xi:xi + 1, :].astype(jnp.float32) * w_ref[co, 0]
            for ci in range(1, c_in):
                acc = acc + (x_ref[xi + ci:xi + ci + 1, :].astype(jnp.float32)
                             * w_ref[co, ci])
            row = b * c_out + co
            o_ref[row:row + 1, :] = (acc + b_ref[co]).astype(o_ref.dtype)


def _mxu_conv1x1_kernel(x_ref, w_ref, b_ref, o_ref):
    """Large-channel / large-batch path: y = W @ x + b on the MXU.

    x_ref: (1, c_in, T) VMEM   w_ref: (c_out, c_in) VMEM   b_ref: (c_out, 1) f32
    """
    y = jnp.dot(w_ref[...], x_ref[0], preferred_element_type=jnp.float32)
    o_ref[0] = (y + b_ref[...]).astype(o_ref.dtype)


def outconv_forward(x_nchw, weight, bias):
    """1x1 conv forward.

    x_nchw : (N, C_in, H, W)
    weight : (C_out, C_in, 1, 1)   (PyTorch Conv2d layout)
    bias   : (C_out,)
    returns: (N, C_out, H, W)
    """
    n, c_in, h, w = x_nchw.shape
    c_out = weight.shape[0]
    hw = h * w
    itemsize = jnp.dtype(x_nchw.dtype).itemsize
    w_mat = weight.reshape(c_out, c_in)

    cost = pl.CostEstimate(
        flops=2 * n * hw * c_in * c_out,
        transcendentals=0,
        bytes_accessed=n * hw * (c_in + c_out) * itemsize
        + (c_out * c_in + c_out) * 4,
    )

    # VPU path only for genuinely tiny channel counts that can be packed into
    # a few sublanes; everything else (including huge-batch tiny-channel) goes
    # to the MXU, which wins long before c_in*c_out ~ 256.
    use_vpu_packed = (c_in < 16 and c_out < 8
                      and n * c_in <= 32 and n * c_out <= 32)

    if use_vpu_packed:
        rows_in, rows_out = n * c_in, n * c_out
        tile_hw = _pick_tile_hw(hw, rows_in, rows_out, itemsize,
                                extra_f32_rows=4, leading_steps=1)
        grid = (pl.cdiv(hw, tile_hw),)
        x2 = x_nchw.reshape(rows_in, hw)           # free (contiguous) view

        out2 = pl.pallas_call(
            functools.partial(_vpu_packed_kernel, n, c_in, c_out),
            out_shape=jax.ShapeDtypeStruct((rows_out, hw), x_nchw.dtype),
            grid=grid,
            in_specs=[
                pl.BlockSpec((rows_in, tile_hw), lambda i: (0, i)),
                pl.BlockSpec(memory_space=pltpu.MemorySpace.SMEM),  # weights
                pl.BlockSpec(memory_space=pltpu.MemorySpace.SMEM),  # bias
            ],
            out_specs=pl.BlockSpec((rows_out, tile_hw), lambda i: (0, i)),
            compiler_params=pltpu.CompilerParams(
                dimension_semantics=("parallel",),
                vmem_limit_bytes=_VMEM_LIMIT_BYTES,
            ),
            cost_estimate=cost,
        )(x2, w_mat.astype(jnp.float32), bias.astype(jnp.float32))
        return out2.reshape(n, c_out, h, w)

    # ---- MXU path: (N, C_in, H*W) view, one dot per (batch, hw-tile). ----
    tile_hw = _pick_tile_hw(hw, c_in, c_out, itemsize,
                            extra_f32_rows=_round_up(c_out, 8),
                            leading_steps=n)
    grid = (n, pl.cdiv(hw, tile_hw))
    x3 = x_nchw.reshape(n, c_in, hw)               # free (contiguous) view

    # Native MXU datapath: bf16/f16 weights for bf16/f16 activations.
    if jnp.dtype(x_nchw.dtype) in (jnp.dtype(jnp.bfloat16), jnp.dtype(jnp.float16)):
        w_dtype = x_nchw.dtype
    else:
        w_dtype = jnp.float32

    out3 = pl.pallas_call(
        _mxu_conv1x1_kernel,
        out_shape=jax.ShapeDtypeStruct((n, c_out, hw), x_nchw.dtype),
        grid=grid,
        in_specs=[
            pl.BlockSpec((1, c_in, tile_hw), lambda b, i: (b, 0, i)),
            pl.BlockSpec((c_out, c_in), lambda b, i: (0, 0)),        # resident
            pl.BlockSpec((c_out, 1), lambda b, i: (0, 0)),           # resident
        ],
        out_specs=pl.BlockSpec((1, c_out, tile_hw), lambda b, i: (b, 0, i)),
        compiler_params=pltpu.CompilerParams(
            dimension_semantics=("parallel", "parallel"),
            vmem_limit_bytes=_VMEM_LIMIT_BYTES,
        ),
        cost_estimate=cost,
    )(x3, w_mat.astype(w_dtype), bias.astype(jnp.float32).reshape(c_out, 1))
    return out3.reshape(n, c_out, h, w)


if __name__ == "__main__":
    key = jax.random.PRNGKey(0)
    k_x, k_w, k_b = jax.random.split(key, 3)

    N, C_IN, C_OUT, H, W = 2, 4, 3, 16, 16

    x = jax.random.normal(k_x, (N, C_IN, H, W), dtype=jnp.float32)
    # Deterministic synthetic parameters (same shapes as nn.Conv2d(in_ch, out_ch, 1))
    weight = jax.random.normal(k_w, (C_OUT, C_IN, 1, 1), dtype=jnp.float32) * 0.1
    bias = jax.random.normal(k_b, (C_OUT,), dtype=jnp.float32) * 0.1

    y = outconv_forward(x, weight, bias)
    y = jax.block_until_ready(y)

    # Reference check (plain JAX einsum, same semantics as the PyTorch conv)
    y_ref = jnp.einsum("nchw,oc->nohw", x, weight.reshape(C_OUT, C_IN)) \
        + bias.reshape(1, C_OUT, 1, 1)
    assert y.shape == (N, C_OUT, H, W)
    assert jnp.allclose(y, y_ref, atol=1e-5, rtol=1e-5), "mismatch vs reference"

    print("KERNEL_OK")
</pallas_src>

<mosaic_0001>
module attributes {stable_mosaic.version = 11 : i64} {
  func.func @_vpu_packed_kernel(%arg0: i32, %arg1: memref<8x128xf32, #tpu.memory_space<vmem>>, %arg2: memref<3x4xf32, #tpu.memory_space<smem>>, %arg3: memref<3xf32, #tpu.memory_space<smem>>, %arg4: memref<6x128xf32, #tpu.memory_space<vmem>>) attributes {dimension_semantics = [#tpu.dimension_semantics<parallel>], iteration_bounds = array<i64: 2>, scalar_prefetch = 0 : i64, scratch_operands = 0 : i64, tpu.core_type = #tpu.core_type<tc>, window_params = [{transform_indices = @transform_0, window_bounds = array<i64: 8, 128>}, {transform_indices = @transform_1, window_bounds = array<i64: 3, 4>}, {transform_indices = @transform_2, window_bounds = array<i64: 3>}, {transform_indices = @transform_3, window_bounds = array<i64: 6, 128>}]} {
    %c0 = arith.constant 0 : index
    %c0_0 = arith.constant 0 : index
    %0 = vector.load %arg1[%c0, %c0_0] : memref<8x128xf32, #tpu.memory_space<vmem>>, vector<1x128xf32>
    %c0_1 = arith.constant 0 : index
    %c0_2 = arith.constant 0 : index
    %1 = memref.load %arg2[%c0_1, %c0_2] : memref<3x4xf32, #tpu.memory_space<smem>>
    %2 = vector.broadcast %1 : f32 to vector<1x128xf32>
    %3 = arith.mulf %0, %2 : vector<1x128xf32>
    %c1 = arith.constant 1 : index
    %c0_3 = arith.constant 0 : index
    %4 = vector.load %arg1[%c1, %c0_3] : memref<8x128xf32, #tpu.memory_space<vmem>>, vector<1x128xf32>
    %c0_4 = arith.constant 0 : index
    %c1_5 = arith.constant 1 : index
    %5 = memref.load %arg2[%c0_4, %c1_5] : memref<3x4xf32, #tpu.memory_space<smem>>
    %6 = vector.broadcast %5 : f32 to vector<1x128xf32>
    %7 = arith.mulf %4, %6 : vector<1x128xf32>
    %8 = arith.addf %3, %7 : vector<1x128xf32>
    %c2 = arith.constant 2 : index
    %c0_6 = arith.constant 0 : index
    %9 = vector.load %arg1[%c2, %c0_6] : memref<8x128xf32, #tpu.memory_space<vmem>>, vector<1x128xf32>
    %c0_7 = arith.constant 0 : index
    %c2_8 = arith.constant 2 : index
    %10 = memref.load %arg2[%c0_7, %c2_8] : memref<3x4xf32, #tpu.memory_space<smem>>
    %11 = vector.broadcast %10 : f32 to vector<1x128xf32>
    %12 = arith.mulf %9, %11 : vector<1x128xf32>
    %13 = arith.addf %8, %12 : vector<1x128xf32>
    %c3 = arith.constant 3 : index
    %c0_9 = arith.constant 0 : index
    %14 = vector.load %arg1[%c3, %c0_9] : memref<8x128xf32, #tpu.memory_space<vmem>>, vector<1x128xf32>
    %c0_10 = arith.constant 0 : index
    %c3_11 = arith.constant 3 : index
    %15 = memref.load %arg2[%c0_10, %c3_11] : memref<3x4xf32, #tpu.memory_space<smem>>
    %16 = vector.broadcast %15 : f32 to vector<1x128xf32>
    %17 = arith.mulf %14, %16 : vector<1x128xf32>
    %18 = arith.addf %13, %17 : vector<1x128xf32>
    %c0_12 = arith.constant 0 : index
    %19 = memref.load %arg3[%c0_12] : memref<3xf32, #tpu.memory_space<smem>>
    %20 = vector.broadcast %19 : f32 to vector<1x128xf32>
    %21 = arith.addf %18, %20 : vector<1x128xf32>
    %c0_13 = arith.constant 0 : index
    %c0_14 = arith.constant 0 : index
    %22 = vector.load %arg4[%c0_13, %c0_14] : memref<6x128xf32, #tpu.memory_space<vmem>>, vector<1x128xf32>
    tpu.vector_store %arg4[%c0_13, %c0_14], %21 {strides = array<i32>} : memref<6x128xf32, #tpu.memory_space<vmem>>, vector<1x128xf32>,
    %c0_15 = arith.constant 0 : index
    %c0_16 = arith.constant 0 : index
    %23 = vector.load %arg1[%c0_15, %c0_16] : memref<8x128xf32, #tpu.memory_space<vmem>>, vector<1x128xf32>
    %c1_17 = arith.constant 1 : index
    %c0_18 = arith.constant 0 : index
    %24 = memref.load %arg2[%c1_17, %c0_18] : memref<3x4xf32, #tpu.memory_space<smem>>
    %25 = vector.broadcast %24 : f32 to vector<1x128xf32>
    %26 = arith.mulf %23, %25 : vector<1x128xf32>
    %c1_19 = arith.constant 1 : index
    %c0_20 = arith.constant 0 : index
    %27 = vector.load %arg1[%c1_19, %c0_20] : memref<8x128xf32, #tpu.memory_space<vmem>>, vector<1x128xf32>
    %c1_21 = arith.constant 1 : index
    %c1_22 = arith.constant 1 : index
    %28 = memref.load %arg2[%c1_21, %c1_22] : memref<3x4xf32, #tpu.memory_space<smem>>
    %29 = vector.broadcast %28 : f32 to vector<1x128xf32>
    %30 = arith.mulf %27, %29 : vector<1x128xf32>
    %31 = arith.addf %26, %30 : vector<1x128xf32>
    %c2_23 = arith.constant 2 : index
    %c0_24 = arith.constant 0 : index
    %32 = vector.load %arg1[%c2_23, %c0_24] : memref<8x128xf32, #tpu.memory_space<vmem>>, vector<1x128xf32>
    %c1_25 = arith.constant 1 : index
    %c2_26 = arith.constant 2 : index
    %33 = memref.load %arg2[%c1_25, %c2_26] : memref<3x4xf32, #tpu.memory_space<smem>>
    %34 = vector.broadcast %33 : f32 to vector<1x128xf32>
    %35 = arith.mulf %32, %34 : vector<1x128xf32>
    %36 = arith.addf %31, %35 : vector<1x128xf32>
    %c3_27 = arith.constant 3 : index
    %c0_28 = arith.constant 0 : index
    %37 = vector.load %arg1[%c3_27, %c0_28] : memref<8x128xf32, #tpu.memory_space<vmem>>, vector<1x128xf32>
    %c1_29 = arith.constant 1 : index
    %c3_30 = arith.constant 3 : index
    %38 = memref.load %arg2[%c1_29, %c3_30] : memref<3x4xf32, #tpu.memory_space<smem>>
    %39 = vector.broadcast %38 : f32 to vector<1x128xf32>
    %40 = arith.mulf %37, %39 : vector<1x128xf32>
    %41 = arith.addf %36, %40 : vector<1x128xf32>
    %c1_31 = arith.constant 1 : index
    %42 = memref.load %arg3[%c1_31] : memref<3xf32, #tpu.memory_space<smem>>
    %43 = vector.broadcast %42 : f32 to vector<1x128xf32>
    %44 = arith.addf %41, %43 : vector<1x128xf32>
    %c1_32 = arith.constant 1 : index
    %c0_33 = arith.constant 0 : index
    %45 = vector.load %arg4[%c1_32, %c0_33] : memref<6x128xf32, #tpu.memory_space<vmem>>, vector<1x128xf32>
    tpu.vector_store %arg4[%c1_32, %c0_33], %44 {strides = array<i32>} : memref<6x128xf32, #tpu.memory_space<vmem>>, vector<1x128xf32>,
    %c0_34 = arith.constant 0 : index
    %c0_35 = arith.constant 0 : index
    %46 = vector.load %arg1[%c0_34, %c0_35] : memref<8x128xf32, #tpu.memory_space<vmem>>, vector<1x128xf32>
    %c2_36 = arith.constant 2 : index
    %c0_37 = arith.constant 0 : index
    %47 = memref.load %arg2[%c2_36, %c0_37] : memref<3x4xf32, #tpu.memory_space<smem>>
    %48 = vector.broadcast %47 : f32 to vector<1x128xf32>
    %49 = arith.mulf %46, %48 : vector<1x128xf32>
    %c1_38 = arith.constant 1 : index
    %c0_39 = arith.constant 0 : index
    %50 = vector.load %arg1[%c1_38, %c0_39] : memref<8x128xf32, #tpu.memory_space<vmem>>, vector<1x128xf32>
    %c2_40 = arith.constant 2 : index
    %c1_41 = arith.constant 1 : index
    %51 = memref.load %arg2[%c2_40, %c1_41] : memref<3x4xf32, #tpu.memory_space<smem>>
    %52 = vector.broadcast %51 : f32 to vector<1x128xf32>
    %53 = arith.mulf %50, %52 : vector<1x128xf32>
    %54 = arith.addf %49, %53 : vector<1x128xf32>
    %c2_42 = arith.constant 2 : index
    %c0_43 = arith.constant 0 : index
    %55 = vector.load %arg1[%c2_42, %c0_43] : memref<8x128xf32, #tpu.memory_space<vmem>>, vector<1x128xf32>
    %c2_44 = arith.constant 2 : index
    %c2_45 = arith.constant 2 : index
    %56 = memref.load %arg2[%c2_44, %c2_45] : memref<3x4xf32, #tpu.memory_space<smem>>
    %57 = vector.broadcast %56 : f32 to vector<1x128xf32>
    %58 = arith.mulf %55, %57 : vector<1x128xf32>
    %59 = arith.addf %54, %58 : vector<1x128xf32>
    %c3_46 = arith.constant 3 : index
    %c0_47 = arith.constant 0 : index
    %60 = vector.load %arg1[%c3_46, %c0_47] : memref<8x128xf32, #tpu.memory_space<vmem>>, vector<1x128xf32>
    %c2_48 = arith.constant 2 : index
    %c3_49 = arith.constant 3 : index
    %61 = memref.load %arg2[%c2_48, %c3_49] : memref<3x4xf32, #tpu.memory_space<smem>>
    %62 = vector.broadcast %61 : f32 to vector<1x128xf32>
    %63 = arith.mulf %60, %62 : vector<1x128xf32>
    %64 = arith.addf %59, %63 : vector<1x128xf32>
    %c2_50 = arith.constant 2 : index
    %65 = memref.load %arg3[%c2_50] : memref<3xf32, #tpu.memory_space<smem>>
    %66 = vector.broadcast %65 : f32 to vector<1x128xf32>
    %67 = arith.addf %64, %66 : vector<1x128xf32>
    %c2_51 = arith.constant 2 : index
    %c0_52 = arith.constant 0 : index
    %68 = vector.load %arg4[%c2_51, %c0_52] : memref<6x128xf32, #tpu.memory_space<vmem>>, vector<1x128xf32>
    tpu.vector_store %arg4[%c2_51, %c0_52], %67 {strides = array<i32>} : memref<6x128xf32, #tpu.memory_space<vmem>>, vector<1x128xf32>,
    %c4 = arith.constant 4 : index
    %c0_53 = arith.constant 0 : index
    %69 = vector.load %arg1[%c4, %c0_53] : memref<8x128xf32, #tpu.memory_space<vmem>>, vector<1x128xf32>
    %c0_54 = arith.constant 0 : index
    %c0_55 = arith.constant 0 : index
    %70 = memref.load %arg2[%c0_54, %c0_55] : memref<3x4xf32, #tpu.memory_space<smem>>
    %71 = vector.broadcast %70 : f32 to vector<1x128xf32>
    %72 = arith.mulf %69, %71 : vector<1x128xf32>
    %c5 = arith.constant 5 : index
    %c0_56 = arith.constant 0 : index
    %73 = vector.load %arg1[%c5, %c0_56] : memref<8x128xf32, #tpu.memory_space<vmem>>, vector<1x128xf32>
    %c0_57 = arith.constant 0 : index
    %c1_58 = arith.constant 1 : index
    %74 = memref.load %arg2[%c0_57, %c1_58] : memref<3x4xf32, #tpu.memory_space<smem>>
    %75 = vector.broadcast %74 : f32 to vector<1x128xf32>
    %76 = arith.mulf %73, %75 : vector<1x128xf32>
    %77 = arith.addf %72, %76 : vector<1x128xf32>
    %c6 = arith.constant 6 : index
    %c0_59 = arith.constant 0 : index
    %78 = vector.load %arg1[%c6, %c0_59] : memref<8x128xf32, #tpu.memory_space<vmem>>, vector<1x128xf32>
    %c0_60 = arith.constant 0 : index
    %c2_61 = arith.constant 2 : index
    %79 = memref.load %arg2[%c0_60, %c2_61] : memref<3x4xf32, #tpu.memory_space<smem>>
    %80 = vector.broadcast %79 : f32 to vector<1x128xf32>
    %81 = arith.mulf %78, %80 : vector<1x128xf32>
    %82 = arith.addf %77, %81 : vector<1x128xf32>
    %c7 = arith.constant 7 : index
    %c0_62 = arith.constant 0 : index
    %83 = vector.load %arg1[%c7, %c0_62] : memref<8x128xf32, #tpu.memory_space<vmem>>, vector<1x128xf32>
    %c0_63 = arith.constant 0 : index
    %c3_64 = arith.constant 3 : index
    %84 = memref.load %arg2[%c0_63, %c3_64] : memref<3x4xf32, #tpu.memory_space<smem>>
    %85 = vector.broadcast %84 : f32 to vector<1x128xf32>
    %86 = arith.mulf %83, %85 : vector<1x128xf32>
    %87 = arith.addf %82, %86 : vector<1x128xf32>
    %c0_65 = arith.constant 0 : index
    %88 = memref.load %arg3[%c0_65] : memref<3xf32, #tpu.memory_space<smem>>
    %89 = vector.broadcast %88 : f32 to vector<1x128xf32>
    %90 = arith.addf %87, %89 : vector<1x128xf32>
    %c3_66 = arith.constant 3 : index
    %c0_67 = arith.constant 0 : index
    %91 = vector.load %arg4[%c3_66, %c0_67] : memref<6x128xf32, #tpu.memory_space<vmem>>, vector<1x128xf32>
    tpu.vector_store %arg4[%c3_66, %c0_67], %90 {strides = array<i32>} : memref<6x128xf32, #tpu.memory_space<vmem>>, vector<1x128xf32>,
    %c4_68 = arith.constant 4 : index
    %c0_69 = arith.constant 0 : index
    %92 = vector.load %arg1[%c4_68, %c0_69] : memref<8x128xf32, #tpu.memory_space<vmem>>, vector<1x128xf32>
    %c1_70 = arith.constant 1 : index
    %c0_71 = arith.constant 0 : index
    %93 = memref.load %arg2[%c1_70, %c0_71] : memref<3x4xf32, #tpu.memory_space<smem>>
    %94 = vector.broadcast %93 : f32 to vector<1x128xf32>
    %95 = arith.mulf %92, %94 : vector<1x128xf32>
    %c5_72 = arith.constant 5 : index
    %c0_73 = arith.constant 0 : index
    %96 = vector.load %arg1[%c5_72, %c0_73] : memref<8x128xf32, #tpu.memory_space<vmem>>, vector<1x128xf32>
    %c1_74 = arith.constant 1 : index
    %c1_75 = arith.constant 1 : index
    %97 = memref.load %arg2[%c1_74, %c1_75] : memref<3x4xf32, #tpu.memory_space<smem>>
    %98 = vector.broadcast %97 : f32 to vector<1x128xf32>
    %99 = arith.mulf %96, %98 : vector<1x128xf32>
    %100 = arith.addf %95, %99 : vector<1x128xf32>
    %c6_76 = arith.constant 6 : index
    %c0_77 = arith.constant 0 : index
    %101 = vector.load %arg1[%c6_76, %c0_77] : memref<8x128xf32, #tpu.memory_space<vmem>>, vector<1x128xf32>
    %c1_78 = arith.constant 1 : index
    %c2_79 = arith.constant 2 : index
    %102 = memref.load %arg2[%c1_78, %c2_79] : memref<3x4xf32, #tpu.memory_space<smem>>
    %103 = vector.broadcast %102 : f32 to vector<1x128xf32>
    %104 = arith.mulf %101, %103 : vector<1x128xf32>
    %105 = arith.addf %100, %104 : vector<1x128xf32>
    %c7_80 = arith.constant 7 : index
    %c0_81 = arith.constant 0 : index
    %106 = vector.load %arg1[%c7_80, %c0_81] : memref<8x128xf32, #tpu.memory_space<vmem>>, vector<1x128xf32>
    %c1_82 = arith.constant 1 : index
    %c3_83 = arith.constant 3 : index
    %107 = memref.load %arg2[%c1_82, %c3_83] : memref<3x4xf32, #tpu.memory_space<smem>>
    %108 = vector.broadcast %107 : f32 to vector<1x128xf32>
    %109 = arith.mulf %106, %108 : vector<1x128xf32>
    %110 = arith.addf %105, %109 : vector<1x128xf32>
    %c1_84 = arith.constant 1 : index
    %111 = memref.load %arg3[%c1_84] : memref<3xf32, #tpu.memory_space<smem>>
    %112 = vector.broadcast %111 : f32 to vector<1x128xf32>
    %113 = arith.addf %110, %112 : vector<1x128xf32>
    %c4_85 = arith.constant 4 : index
    %c0_86 = arith.constant 0 : index
    %114 = vector.load %arg4[%c4_85, %c0_86] : memref<6x128xf32, #tpu.memory_space<vmem>>, vector<1x128xf32>
    tpu.vector_store %arg4[%c4_85, %c0_86], %113 {strides = array<i32>} : memref<6x128xf32, #tpu.memory_space<vmem>>, vector<1x128xf32>,
    %c4_87 = arith.constant 4 : index
    %c0_88 = arith.constant 0 : index
    %115 = vector.load %arg1[%c4_87, %c0_88] : memref<8x128xf32, #tpu.memory_space<vmem>>, vector<1x128xf32>
    %c2_89 = arith.constant 2 : index
    %c0_90 = arith.constant 0 : index
    %116 = memref.load %arg2[%c2_89, %c0_90] : memref<3x4xf32, #tpu.memory_space<smem>>
    %117 = vector.broadcast %116 : f32 to vector<1x128xf32>
    %118 = arith.mulf %115, %117 : vector<1x128xf32>
    %c5_91 = arith.constant 5 : index
    %c0_92 = arith.constant 0 : index
    %119 = vector.load %arg1[%c5_91, %c0_92] : memref<8x128xf32, #tpu.memory_space<vmem>>, vector<1x128xf32>
    %c2_93 = arith.constant 2 : index
    %c1_94 = arith.constant 1 : index
    %120 = memref.load %arg2[%c2_93, %c1_94] : memref<3x4xf32, #tpu.memory_space<smem>>
    %121 = vector.broadcast %120 : f32 to vector<1x128xf32>
    %122 = arith.mulf %119, %121 : vector<1x128xf32>
    %123 = arith.addf %118, %122 : vector<1x128xf32>
    %c6_95 = arith.constant 6 : index
    %c0_96 = arith.constant 0 : index
    %124 = vector.load %arg1[%c6_95, %c0_96] : memref<8x128xf32, #tpu.memory_space<vmem>>, vector<1x128xf32>
    %c2_97 = arith.constant 2 : index
    %c2_98 = arith.constant 2 : index
    %125 = memref.load %arg2[%c2_97, %c2_98] : memref<3x4xf32, #tpu.memory_space<smem>>
    %126 = vector.broadcast %125 : f32 to vector<1x128xf32>
    %127 = arith.mulf %124, %126 : vector<1x128xf32>
    %128 = arith.addf %123, %127 : vector<1x128xf32>
    %c7_99 = arith.constant 7 : index
    %c0_100 = arith.constant 0 : index
    %129 = vector.load %arg1[%c7_99, %c0_100] : memref<8x128xf32, #tpu.memory_space<vmem>>, vector<1x128xf32>
    %c2_101 = arith.constant 2 : index
    %c3_102 = arith.constant 3 : index
    %130 = memref.load %arg2[%c2_101, %c3_102] : memref<3x4xf32, #tpu.memory_space<smem>>
    %131 = vector.broadcast %130 : f32 to vector<1x128xf32>
    %132 = arith.mulf %129, %131 : vector<1x128xf32>
    %133 = arith.addf %128, %132 : vector<1x128xf32>
    %c2_103 = arith.constant 2 : index
    %134 = memref.load %arg3[%c2_103] : memref<3xf32, #tpu.memory_space<smem>>
    %135 = vector.broadcast %134 : f32 to vector<1x128xf32>
    %136 = arith.addf %133, %135 : vector<1x128xf32>
    %c5_104 = arith.constant 5 : index
    %c0_105 = arith.constant 0 : index
    %137 = vector.load %arg4[%c5_104, %c0_105] : memref<6x128xf32, #tpu.memory_space<vmem>>, vector<1x128xf32>
    tpu.vector_store %arg4[%c5_104, %c0_105], %136 {strides = array<i32>} : memref<6x128xf32, #tpu.memory_space<vmem>>, vector<1x128xf32>,
    return
  }
  func.func @transform_0(%arg0: i32) -> (i32, i32) {
    %c0_i32 = arith.constant 0 : i32
    %c0_i32_0 = arith.constant 0 : i32
    return %c0_i32, %arg0 : i32, i32
  }
  func.func @transform_1(%arg0: i32) -> (i32, i32) {
    %c0_i32 = arith.constant 0 : i32
    %c0_i32_0 = arith.constant 0 : i32
    %c0_i32_1 = arith.constant 0 : i32
    return %c0_i32, %c0_i32_0 : i32, i32
  }
  func.func @transform_2(%arg0: i32) -> i32 {
    %c0_i32 = arith.constant 0 : i32
    %c0_i32_0 = arith.constant 0 : i32
    return %c0_i32 : i32
  }
  func.func @transform_3(%arg0: i32) -> (i32, i32) {
    %c0_i32 = arith.constant 0 : i32
    %c0_i32_0 = arith.constant 0 : i32
    return %c0_i32, %arg0 : i32, i32
  }
}

</mosaic_0001>

<llo_original>
// kernel: tpu_custom_call.1
$region0: #{tpu_custom_call.1}
  #allocation0 [shape = 'u32[]', space=smem, size = 0x4, offset = 0x4, fixed_abs, tag = 'smem constant byte address 0x4 - core index']
  #allocation1 [shape = 'u32[144,128]{1,0:T(1,128)}', space=vmem, size = 0x12000, scoped, tag = 'internal scratch']
  %s0 = inlined_call_operand.hbm [shape: f32[8,256], index: 0, kind: input, shape index: {}]
  %s1 = inlined_call_operand.hbm [shape: f32[3,4], index: 1, kind: input, shape index: {}]
  %s2 = inlined_call_operand.vmem [shape: f32[3], index: 2, kind: input, shape index: {}]
  %s3 = inlined_call_operand.hbm [shape: f32[6,256], index: 3, kind: output, shape index: {}]
  %s4 = sld [smem:[#allocation0]]
  $region57: #{tpu_custom_call.1} parent=0
    _
  %s6 = ssub.s32 1, %s4
  %s7 = scalar_select 0, %s6, %s4
  $region1: #{tpu_custom_call.1} parent=0
    #allocation2 [shape = 'u8[8192]{0}', space=vmem, size = 0x2000, scoped, tag = 'input window, operand 0']
    #allocation3 [shape = 's32[2]{0}', space=sflag, size = 0x8, scoped, tag = 'scoped memory for tpu_custom_call.1']
    #allocation4 [shape = 's32[2]{0}', space=sflag, size = 0x8, scoped, tag = 'scoped memory for tpu_custom_call.1']
    #allocation5 [shape = 's32[2]{0}', space=sflag, size = 0x8, scoped, tag = 'scoped memory for tpu_custom_call.1']
    #allocation6 [shape = 's32[2]{0}', space=sflag, size = 0x8, scoped, tag = 'scoped memory for tpu_custom_call.1']
    #allocation7 [shape = 'u8[2048]{0}', space=smem, size = 0x800, scoped, tag = 'input window, operand 1, single buffered']
    #allocation8 [shape = 'u8[512]{0}', space=smem, size = 0x200, scoped, tag = 'input window, operand 2, single buffered']
    #allocation9 [shape = 'u8[8192]{0}', space=vmem, size = 0x2000, scoped, tag = 'output window, operand 0']
    %8 = vsyncpa [#allocation3], 0
    %s9 = scalar_lea.sflag [#allocation3], 1
    %10 = vsyncpa %s9, 0
    %11 = vsyncpa [#allocation5], 0
    %12 = vsyncpa [#allocation6], 0
    %13 = vsyncpa [#allocation4], 0
    %s14 = scalar_lea.sflag [#allocation4], 1
    %15 = vsyncpa %s14, 0
    loop: start=0, step=1, limit=4
    $region2: #{tpu_custom_call.1} parent=1 // loop_pre_header
      _
    $region3: #{tpu_custom_call.1} parent=1 // loop_header
      %s17 = sphi 0, %s21
      %p18 = scmp.ge.s32.totalorder %s17, 4
      %s27 = sphi 0, %s29
      %s30 = sphi 0, %s27
      %s31 = sphi 0, %s30
      %s47 = sphi 0, %s31
      %s51 = sphi 0, %s51
      %s53 = sphi 0, %s51
      %s54 = sphi 0, %s53
      %s68 = sphi 0, %s54
      %s72 = sphi 0, %s72
      %s74 = sphi 0, %s72
      %s75 = sphi 0, %s74
      %s89 = sphi 0, %s75
      %s95 = sphi 0, %s97
      %s98 = sphi 0, %s95
      %s99 = sphi 0, %s98
      %s115 = sphi 0, %s99
    $region4: #{tpu_custom_call.1} parent=1 // loop_header_branch
      %20 = sbr.rel (%p18) target = $region8
    $region5: #{tpu_custom_call.1} parent=1 // loop_body
      %s22 = ssub.s32 %s17, 1
      %s23 = ssub.s32 %s17, 2
      %s24 = sadd.s32 %s17, 1
      %s25 = ssub.s32 %s17, %s24
      %p26 = scmp.eq.s32.totalorder %s25, 0
      %s28 = sadd.s32 %s27, 1
      %s29 = scalar_select %p26, %s27, %s28
      %p32 = pneg %p26
      %p33 = scmp.eq.s32.totalorder %s17, 1
      %p34 = por %p32, %p33
      %p35 = scmp.ne.s32.totalorder %s27, %s30
      %p36 = scmp.eq.s32.totalorder %s17, 0
      %p37 = por %p35, %p36
      %p38 = scmp.ne.s32.totalorder %s27, %s30
      %p39 = scmp.eq.s32.totalorder %s22, 1
      %p40 = por %p38, %p39
      %p41 = scmp.ne.s32.totalorder %s30, %s31
      %p42 = scmp.eq.s32.totalorder %s22, 0
      %p43 = por %p41, %p42
      %p44 = scmp.ne.s32.totalorder %s30, %s31
      %p45 = scmp.eq.s32.totalorder %s23, 1
      %p46 = por %p44, %p45
      %p48 = scmp.ne.s32.totalorder %s31, %s47
      %p49 = scmp.eq.s32.totalorder %s23, 0
      %p50 = por %p48, %p49
      %s52 = sadd.s32 %s51, 1
      %p55 = scmp.eq.s32.totalorder %s17, 1
      %p56 = scmp.ne.s32.totalorder %s51, %s53
      %p57 = scmp.eq.s32.totalorder %s17, 0
      %p58 = por %p56, %p57
      %p59 = scmp.ne.s32.totalorder %s51, %s53
      %p60 = scmp.eq.s32.totalorder %s22, 1
      %p61 = por %p59, %p60
      %p62 = scmp.ne.s32.totalorder %s53, %s54
      %p63 = scmp.eq.s32.totalorder %s22, 0
      %p64 = por %p62, %p63
      %p65 = scmp.ne.s32.totalorder %s53, %s54
      %p66 = scmp.eq.s32.totalorder %s23, 1
      %p67 = por %p65, %p66
      %p69 = scmp.ne.s32.totalorder %s54, %s68
      %p70 = scmp.eq.s32.totalorder %s23, 0
      %p71 = por %p69, %p70
      %s73 = sadd.s32 %s72, 1
      %p76 = scmp.eq.s32.totalorder %s17, 1
      %p77 = scmp.ne.s32.totalorder %s72, %s74
      %p78 = scmp.eq.s32.totalorder %s17, 0
      %p79 = por %p77, %p78
      %p80 = scmp.ne.s32.totalorder %s72, %s74
      %p81 = scmp.eq.s32.totalorder %s22, 1
      %p82 = por %p80, %p81
      %p83 = scmp.ne.s32.totalorder %s74, %s75
      %p84 = scmp.eq.s32.totalorder %s22, 0
      %p85 = por %p83, %p84
      %p86 = scmp.ne.s32.totalorder %s74, %s75
      %p87 = scmp.eq.s32.totalorder %s23, 1
      %p88 = por %p86, %p87
      %p90 = scmp.ne.s32.totalorder %s75, %s89
      %p91 = scmp.eq.s32.totalorder %s23, 0
      %p92 = por %p90, %p91
      %s93 = ssub.s32 %s17, %s24
      %p94 = scmp.eq.s32.totalorder %s93, 0
      %s96 = sadd.s32 %s95, 1
      %s97 = scalar_select %p94, %s95, %s96
      %p100 = pneg %p94
      %p101 = scmp.eq.s32.totalorder %s17, 1
      %p102 = por %p100, %p101
      %p103 = scmp.ne.s32.totalorder %s95, %s98
      %p104 = scmp.eq.s32.totalorder %s17, 0
      %p105 = por %p103, %p104
      %p106 = scmp.ne.s32.totalorder %s95, %s98
      %p107 = scmp.eq.s32.totalorder %s22, 1
      %p108 = por %p106, %p107
      %p109 = scmp.ne.s32.totalorder %s98, %s99
      %p110 = scmp.eq.s32.totalorder %s22, 0
      %p111 = por %p109, %p110
      %p112 = scmp.ne.s32.totalorder %s98, %s99
      %p113 = scmp.eq.s32.totalorder %s23, 1
      %p114 = por %p112, %p113
      %p116 = scmp.ne.s32.totalorder %s99, %s115
      %p117 = scmp.eq.s32.totalorder %s23, 0
      %p118 = por %p116, %p117
      %p119 = scmp.le.s32.totalorder 1, %s17
      %p120 = scmp.lt.s32.totalorder %s17, 3
      %p121 = pnand %p119, %p120
      %p122 = pneg %p121
      // Predicated region
      $region9: #{tpu_custom_call.1} parent=5 // pred_check
        _
      $region10: #{tpu_custom_call.1} parent=5 // pred_check_branch
        %124 = sbr.rel (%p121) target = $region12
      $region11: #{tpu_custom_call.1} parent=5 // pred_region
        %s125 = ssub.s32 %s17, 1
        // Predicated region
        $region13: #{tpu_custom_call.1} parent=11 // pred_check
          %p126 = pneg %p64
        $region14: #{tpu_custom_call.1} parent=11 // pred_check_branch
          %128 = sbr.rel (%p126) target = $region16
        $region15: #{tpu_custom_call.1} parent=11 // pred_region
          %s130 = ssub.s32 64, 64
          %131 = vsyncadd [#allocation5], %s130
          %134 = dma.hbm_to_smem %s1, 64, [#allocation7], [#allocation5]
        $region16: #{tpu_custom_call.1} parent=11 // pred_fallthru
          _
        // Predicated region
        $region17: #{tpu_custom_call.1} parent=11 // pred_check
          %p135 = pneg %p85
        $region18: #{tpu_custom_call.1} parent=11 // pred_check_branch
          %137 = sbr.rel (%p135) target = $region20
        $region19: #{tpu_custom_call.1} parent=11 // pred_region
          %s139 = ssub.s32 16, 16
          %140 = vsyncadd [#allocation6], %s139
          %s142 = sshll.u32 %s2, 4
          %s143 = int_to_ptr.vmem [resolvable:$true] %s142
          %145 = dma.vmem_to_smem %s143, 16, [#allocation8], [#allocation6]
        $region20: #{tpu_custom_call.1} parent=11 // pred_fallthru
          _
      $region12: #{tpu_custom_call.1} parent=5 // pred_fallthru
        _
      %p146 = scmp.lt.s32.totalorder %s17, 2
      // Predicated region
      $region21: #{tpu_custom_call.1} parent=5 // pred_check
        %p147 = pneg %p146
      $region22: #{tpu_custom_call.1} parent=5 // pred_check_branch
        %149 = sbr.rel (%p147) target = $region24
      $region23: #{tpu_custom_call.1} parent=5 // pred_region
        // Predicated region
        $region25: #{tpu_custom_call.1} parent=23 // pred_check
          %p150 = pneg %p37
        $region26: #{tpu_custom_call.1} parent=23 // pred_check_branch
          %152 = sbr.rel (%p150) target = $region28
        $region27: #{tpu_custom_call.1} parent=23 // pred_region
          %s153 = sand.u32 %s27, 1
          %s154 = scalar_lea.sflag [#allocation3], %s153
          %s155 = sand.u32 %s27, 1
          %s156 = smul.addr %s155, 8
          %s157 = scalar_lea.vmem [#allocation2], %s156
          %s159 = ssub.s32 128, 128
          %160 = vsyncadd %s154, %s159
          %s161 = smul.addr %s17, 128
          %s162 = scalar_lea.hbm %s0, %s161
          %s164 = sshll.u32 %s157, 4
          %s165 = int_to_ptr.vmem [resolvable:$true] %s164
          %167 = dma.hbm_to_vmem [thread:$0]  %s162, 128, %s165, %s154
        $region28: #{tpu_custom_call.1} parent=23 // pred_fallthru
          _
      $region24: #{tpu_custom_call.1} parent=5 // pred_fallthru
        _
      %p168 = scmp.le.s32.totalorder 1, %s17
      %p169 = scmp.lt.s32.totalorder %s17, 3
      %p170 = pnand %p168, %p169
      %p171 = pneg %p170
      // Predicated region
      $region29: #{tpu_custom_call.1} parent=5 // pred_check
        _
      $region30: #{tpu_custom_call.1} parent=5 // pred_check_branch
        %173 = sbr.rel (%p170) target = $region32
      $region31: #{tpu_custom_call.1} parent=5 // pred_region
        %s174 = ssub.s32 %s17, 1
        %s175 = sand.u32 %s30, 1
        %s176 = scalar_lea.sflag [#allocation3], %s175
        %s177 = sand.u32 %s30, 1
        %s178 = smul.addr %s177, 8
        %s179 = scalar_lea.vmem [#allocation2], %s178
        // Predicated region
        $region33: #{tpu_custom_call.1} parent=31 // pred_check
          %p180 = pneg %p43
        $region34: #{tpu_custom_call.1} parent=31 // pred_check_branch
          %182 = sbr.rel (%p180) target = $region36
        $region35: #{tpu_custom_call.1} parent=31 // pred_region
          %183 = dma.done %s176, 128
        $region36: #{tpu_custom_call.1} parent=31 // pred_fallthru
          _
        // Predicated region
        $region37: #{tpu_custom_call.1} parent=31 // pred_check
          %p184 = pneg %p64
        $region38: #{tpu_custom_call.1} parent=31 // pred_check_branch
          %186 = sbr.rel (%p184) target = $region40
        $region39: #{tpu_custom_call.1} parent=31 // pred_region
          %187 = dma.done [#allocation5], 64
        $region40: #{tpu_custom_call.1} parent=31 // pred_fallthru
          _
        // Predicated region
        $region41: #{tpu_custom_call.1} parent=31 // pred_check
          %p188 = pneg %p85
        $region42: #{tpu_custom_call.1} parent=31 // pred_check_branch
          %190 = sbr.rel (%p188) target = $region44
        $region43: #{tpu_custom_call.1} parent=31 // pred_region
          %191 = dma.done [#allocation6], 16
        $region44: #{tpu_custom_call.1} parent=31 // pred_fallthru
          _
        %192 = sfence
        %s193 = sand.u32 %s30, 1
        %s194 = scalar_lea.sflag [#allocation3], %s193
        %s195 = sand.u32 %s30, 1
        %s196 = smul.addr %s195, 8
        %s197 = scalar_lea.vmem [#allocation2], %s196
        %p198 = pneg %p43
        %p199 = pneg %p40
        %p200 = pneg %p64
        %p201 = pneg %p61
        %p202 = pneg %p85
        %p203 = pneg %p82
        %p204 = pneg %p111
        %p205 = pneg %p108
        %s206 = sand.u32 %s98, 1
        %s207 = scalar_lea.sflag [#allocation4], %s206
        %s208 = sand.u32 %s98, 1
        %s209 = smul.addr %s208, 8
        %s210 = scalar_lea.vmem [#allocation9], %s209
        %v211 = vld [vmem:[%s179] sm:$0x1]
        %s212 = sld [smem:[#allocation7]]
        %v213 = vstv %s212
        %v214 = vmul.f32 %v211, %v213
        %v215 = vld [vmem:[%s179 + $0x1] sm:$0x1]
        %s216 = sld [smem:[#allocation7 + $0x1]]
        %v217 = vstv %s216
        %v218 = vmul.f32 %v215, %v217
        %v219 = vadd.f32 %v214, %v218
        %v220 = vld [vmem:[%s179 + $0x2] sm:$0x1]
        %s221 = sld [smem:[#allocation7 + $0x2]]
        %v222 = vstv %s221
        %v223 = vmul.f32 %v220, %v222
        %v224 = vadd.f32 %v219, %v223
        %v225 = vld [vmem:[%s179 + $0x3] sm:$0x1]
        %s226 = sld [smem:[#allocation7 + $0x3]]
        %v227 = vstv %s226
        %v228 = vmul.f32 %v225, %v227
        %v229 = vadd.f32 %v224, %v228
        %s230 = sld [smem:[#allocation8]]
        %v231 = vstv %s230
        %v232 = vadd.f32 %v229, %v231
        %233 = vst [vmem:[%s210] sm:$0x1] %v232
        %v234 = vld [vmem:[%s179] sm:$0x1]
        %s235 = sld [smem:[#allocation7 + $0x80]]
        %v236 = vstv %s235
        %v237 = vmul.f32 %v234, %v236
        %v238 = vld [vmem:[%s179 + $0x1] sm:$0x1]
        %s239 = sld [smem:[#allocation7 + $0x81]]
        %v240 = vstv %s239
        %v241 = vmul.f32 %v238, %v240
        %v242 = vadd.f32 %v237, %v241
        %v243 = vld [vmem:[%s179 + $0x2] sm:$0x1]
        %s244 = sld [smem:[#allocation7 + $0x82]]
        %v245 = vstv %s244
        %v246 = vmul.f32 %v243, %v245
        %v247 = vadd.f32 %v242, %v246
        %v248 = vld [vmem:[%s179 + $0x3] sm:$0x1]
        %s249 = sld [smem:[#allocation7 + $0x83]]
        %v250 = vstv %s249
        %v251 = vmul.f32 %v248, %v250
        %v252 = vadd.f32 %v247, %v251
        %s253 = sld [smem:[#allocation8 + $0x1]]
        %v254 = vstv %s253
        %v255 = vadd.f32 %v252, %v254
        %256 = vst [vmem:[%s210 + $0x1] sm:$0x1] %v255
        %v257 = vld [vmem:[%s179] sm:$0x1]
        %s258 = sld [smem:[#allocation7 + $0x100]]
        %v259 = vstv %s258
        %v260 = vmul.f32 %v257, %v259
        %v261 = vld [vmem:[%s179 + $0x1] sm:$0x1]
        %s262 = sld [smem:[#allocation7 + $0x101]]
        %v263 = vstv %s262
        %v264 = vmul.f32 %v261, %v263
        %v265 = vadd.f32 %v260, %v264
        %v266 = vld [vmem:[%s179 + $0x2] sm:$0x1]
        %s267 = sld [smem:[#allocation7 + $0x102]]
        %v268 = vstv %s267
        %v269 = vmul.f32 %v266, %v268
        %v270 = vadd.f32 %v265, %v269
        %v271 = vld [vmem:[%s179 + $0x3] sm:$0x1]
        %s272 = sld [smem:[#allocation7 + $0x103]]
        %v273 = vstv %s272
        %v274 = vmul.f32 %v271, %v273
        %v275 = vadd.f32 %v270, %v274
        %s276 = sld [smem:[#allocation8 + $0x2]]
        %v277 = vstv %s276
        %v278 = vadd.f32 %v275, %v277
        %279 = vst [vmem:[%s210 + $0x2] sm:$0x1] %v278
        %v280 = vld [vmem:[%s179 + $0x4] sm:$0x1]
        %s281 = sld [smem:[#allocation7]]
        %v282 = vstv %s281
        %v283 = vmul.f32 %v280, %v282
        %v284 = vld [vmem:[%s179 + $0x5] sm:$0x1]
        %s285 = sld [smem:[#allocation7 + $0x1]]
        %v286 = vstv %s285
        %v287 = vmul.f32 %v284, %v286
        %v288 = vadd.f32 %v283, %v287
        %v289 = vld [vmem:[%s179 + $0x6] sm:$0x1]
        %s290 = sld [smem:[#allocation7 + $0x2]]
        %v291 = vstv %s290
        %v292 = vmul.f32 %v289, %v291
        %v293 = vadd.f32 %v288, %v292
        %v294 = vld [vmem:[%s179 + $0x7] sm:$0x1]
        %s295 = sld [smem:[#allocation7 + $0x3]]
        %v296 = vstv %s295
        %v297 = vmul.f32 %v294, %v296
        %v298 = vadd.f32 %v293, %v297
        %s299 = sld [smem:[#allocation8]]
        %v300 = vstv %s299
        %v301 = vadd.f32 %v298, %v300
        %302 = vst [vmem:[%s210 + $0x3] sm:$0x1] %v301
        %v303 = vld [vmem:[%s179 + $0x4] sm:$0x1]
        %s304 = sld [smem:[#allocation7 + $0x80]]
        %v305 = vstv %s304
        %v306 = vmul.f32 %v303, %v305
        %v307 = vld [vmem:[%s179 + $0x5] sm:$0x1]
        %s308 = sld [smem:[#allocation7 + $0x81]]
        %v309 = vstv %s308
        %v310 = vmul.f32 %v307, %v309
        %v311 = vadd.f32 %v306, %v310
        %v312 = vld [vmem:[%s179 + $0x6] sm:$0x1]
        %s313 = sld [smem:[#allocation7 + $0x82]]
        %v314 = vstv %s313
        %v315 = vmul.f32 %v312, %v314
        %v316 = vadd.f32 %v311, %v315
        %v317 = vld [vmem:[%s179 + $0x7] sm:$0x1]
        %s318 = sld [smem:[#allocation7 + $0x83]]
        %v319 = vstv %s318
        %v320 = vmul.f32 %v317, %v319
        %v321 = vadd.f32 %v316, %v320
        %s322 = sld [smem:[#allocation8 + $0x1]]
        %v323 = vstv %s322
        %v324 = vadd.f32 %v321, %v323
        %325 = vst [vmem:[%s210 + $0x4] sm:$0x1] %v324
        %v326 = vld [vmem:[%s179 + $0x4] sm:$0x1]
        %s327 = sld [smem:[#allocation7 + $0x100]]
        %v328 = vstv %s327
        %v329 = vmul.f32 %v326, %v328
        %v330 = vld [vmem:[%s179 + $0x5] sm:$0x1]
        %s331 = sld [smem:[#allocation7 + $0x101]]
        %v332 = vstv %s331
        %v333 = vmul.f32 %v330, %v332
        %v334 = vadd.f32 %v329, %v333
        %v335 = vld [vmem:[%s179 + $0x6] sm:$0x1]
        %s336 = sld [smem:[#allocation7 + $0x102]]
        %v337 = vstv %s336
        %v338 = vmul.f32 %v335, %v337
        %v339 = vadd.f32 %v334, %v338
        %v340 = vld [vmem:[%s179 + $0x7] sm:$0x1]
        %s341 = sld [smem:[#allocation7 + $0x103]]
        %v342 = vstv %s341
        %v343 = vmul.f32 %v340, %v342
        %v344 = vadd.f32 %v339, %v343
        %s345 = sld [smem:[#allocation8 + $0x2]]
        %v346 = vstv %s345
        %v347 = vadd.f32 %v344, %v346
        %348 = vst [vmem:[%s210 + $0x5] sm:$0x1] %v347
        %s349 = sand.u32 %s98, 1
        %s350 = scalar_lea.sflag [#allocation4], %s349
        %s351 = sand.u32 %s98, 1
        %s352 = smul.addr %s351, 8
        %s353 = scalar_lea.vmem [#allocation9], %s352
        // Predicated region
        $region45: #{tpu_custom_call.1} parent=31 // pred_check
          %p354 = pneg %p108
        $region46: #{tpu_custom_call.1} parent=31 // pred_check_branch
          %356 = sbr.rel (%p354) target = $region48
        $region47: #{tpu_custom_call.1} parent=31 // pred_region
          %s358 = ssub.s32 128, 128
          %359 = vsyncadd %s350, %s358
          %s360 = smul.addr %s22, 128
          %s361 = scalar_lea.hbm %s3, %s360
          %s363 = sshll.u32 %s353, 4
          %s364 = int_to_ptr.vmem [resolvable:$true] %s363
          %366 = dma.vmem_to_hbm [thread:$0]  %s364, 128, %s361, %s350
        $region48: #{tpu_custom_call.1} parent=31 // pred_fallthru
          _
      $region32: #{tpu_custom_call.1} parent=5 // pred_fallthru
        _
      %p367 = scmp.le.s32.totalorder 2, %s17
      // Predicated region
      $region49: #{tpu_custom_call.1} parent=5 // pred_check
        %p368 = pneg %p367
      $region50: #{tpu_custom_call.1} parent=5 // pred_check_branch
        %370 = sbr.rel (%p368) target = $region52
      $region51: #{tpu_custom_call.1} parent=5 // pred_region
        %s371 = ssub.s32 %s17, 2
        // Predicated region
        $region53: #{tpu_custom_call.1} parent=51 // pred_check
          %p372 = pneg %p114
        $region54: #{tpu_custom_call.1} parent=51 // pred_check_branch
          %374 = sbr.rel (%p372) target = $region56
        $region55: #{tpu_custom_call.1} parent=51 // pred_region
          %s375 = sand.u32 %s99, 1
          %s376 = scalar_lea.sflag [#allocation4], %s375
          %s377 = sand.u32 %s99, 1
          %s378 = smul.addr %s377, 8
          %s379 = scalar_lea.vmem [#allocation9], %s378
          %380 = dma.done %s376, 128
        $region56: #{tpu_custom_call.1} parent=51 // pred_fallthru
          _
      $region52: #{tpu_custom_call.1} parent=5 // pred_fallthru
        _
    $region6: #{tpu_custom_call.1} parent=1 // loop_footer
      %s21 = sadd.s32 1, %s17
    $region7: #{tpu_custom_call.1} parent=1 // loop_footer_branch
      %16 = sbr.rel target = $region3
    $region8: #{tpu_custom_call.1} parent=1 // loop_exit
      _
    %381 = vsyncpa [#allocation3], 1
    %s382 = scalar_lea.sflag [#allocation3], 1
    %383 = vsyncpa %s382, 1
    %384 = vsyncpa [#allocation4], 1
    %s385 = scalar_lea.sflag [#allocation4], 1
    %386 = vsyncpa %s385, 1
    %387 = vsyncpa [#allocation5], 1
    %s388 = scalar_lea.sflag [#allocation5], 1
    %389 = vsyncpa %s388, 1
    %390 = vsyncpa [#allocation6], 1
    %s391 = scalar_lea.sflag [#allocation6], 1
    %392 = vsyncpa %s391, 1

</llo_original>
